<compile_context>
chip_gen: v6e
topology: v6e:2x2x1
jax: 0.10.0
libtpu: 0.0.40
codegen_flags: <defaults>
</compile_context>

<pallas_src>
import jax
import jax.numpy as jnp
from jax.experimental import pallas as pl
from jax.experimental.pallas import tpu as pltpu

INPUT_DIM = 28 * 28
WIDTH = 8
N_CLASS = 10
HID_PAD = 128          # hidden dim padded to one full lane tile
OUT_PAD = 128          # lane-dense padded output width (>= N_CLASS)
TILE_M_MAX = 2048      # batch rows per grid step (f32/bf16 blocks ~9 MiB total)


def _round_up(n: int, m: int) -> int:
    return ((n + m - 1) // m) * m


def mlp_kernel(x_ref, w1p_ref, w2p_ref, o_ref):
    # x_ref:  (TILE_M, 784)  bf16
    # w1p_ref:(784, 128)     bf16   (W1.T zero-padded to 128 hidden lanes)
    # w2p_ref:(128, 128)     bf16   (W2.T zero-padded rows/cols)
    # o_ref:  (TILE_M, 128)  f32
    x = x_ref[...]
    h = jnp.dot(x, w1p_ref[...], preferred_element_type=jnp.float32)   # (TILE_M, 128)
    h = jnp.maximum(h, 0.0).astype(jnp.bfloat16)                        # ReLU
    o_ref[...] = jnp.dot(h, w2p_ref[...],
                         preferred_element_type=jnp.float32)            # (TILE_M, 128)


def net_forward(x, w1, w2):
    """x: any shape reshapeable to (B, 784) (e.g. (B,1,28,28)).
    w1: (WIDTH, INPUT_DIM), w2: (N_CLASS, WIDTH) — PyTorch nn.Linear layout.
    Returns logits (B, N_CLASS) float32."""
    x2d = x.reshape(-1, INPUT_DIM).astype(jnp.bfloat16)
    b = x2d.shape[0]

    # Batch tile: multiple of 8 sublanes, capped at TILE_M_MAX. Pad B to a
    # multiple of the tile with zero rows (sliced off afterwards).
    tile_m = min(TILE_M_MAX, _round_up(b, 8))
    padded_b = _round_up(b, tile_m)
    if padded_b != b:
        x2d = jnp.pad(x2d, ((0, padded_b - b), (0, 0)))

    # Pre-transpose / zero-pad the weights once in the wrapper (loop-invariant,
    # VMEM-resident across all grid steps).
    w1p = jnp.zeros((INPUT_DIM, HID_PAD), jnp.bfloat16)
    w1p = w1p.at[:, :WIDTH].set(w1.T.astype(jnp.bfloat16))              # (784, 128)
    w2p = jnp.zeros((HID_PAD, OUT_PAD), jnp.bfloat16)
    w2p = w2p.at[:WIDTH, :N_CLASS].set(w2.T.astype(jnp.bfloat16))       # (128, 128)

    grid = (padded_b // tile_m,)

    flops = 2 * padded_b * INPUT_DIM * HID_PAD + 2 * padded_b * HID_PAD * OUT_PAD
    bytes_accessed = (padded_b * INPUT_DIM * 2      # x (bf16)
                      + INPUT_DIM * HID_PAD * 2     # w1p
                      + HID_PAD * OUT_PAD * 2       # w2p
                      + padded_b * OUT_PAD * 4)     # out (f32)

    out_padded = pl.pallas_call(
        mlp_kernel,
        out_shape=jax.ShapeDtypeStruct((padded_b, OUT_PAD), jnp.float32),
        grid=grid,
        in_specs=[
            pl.BlockSpec((tile_m, INPUT_DIM), lambda i: (i, 0)),
            pl.BlockSpec((INPUT_DIM, HID_PAD), lambda i: (0, 0)),
            pl.BlockSpec((HID_PAD, OUT_PAD), lambda i: (0, 0)),
        ],
        out_specs=pl.BlockSpec((tile_m, OUT_PAD), lambda i: (i, 0)),
        compiler_params=pltpu.CompilerParams(
            dimension_semantics=("parallel",),
        ),
        cost_estimate=pl.CostEstimate(
            flops=flops, transcendentals=0, bytes_accessed=bytes_accessed),
    )(x2d, w1p, w2p)

    return out_padded[:b, :N_CLASS]


def init_params(key):
    """Deterministic init mimicking nn.Linear default (uniform +/- 1/sqrt(fan_in))."""
    k1, k2 = jax.random.split(key)
    bound1 = 1.0 / (INPUT_DIM ** 0.5)
    bound2 = 1.0 / (WIDTH ** 0.5)
    w1 = jax.random.uniform(k1, (WIDTH, INPUT_DIM), jnp.float32,
                            minval=-bound1, maxval=bound1)
    w2 = jax.random.uniform(k2, (N_CLASS, WIDTH), jnp.float32,
                            minval=-bound2, maxval=bound2)
    return w1, w2


if __name__ == "__main__":
    key = jax.random.PRNGKey(0)
    kx, kp = jax.random.split(key)
    # Small batch, NCHW input like a MNIST-style loader would feed the net.
    x = jax.random.normal(kx, (2, 1, 28, 28), jnp.float32)
    w1, w2 = init_params(kp)

    out = net_forward(x, w1, w2)
    out = jax.block_until_ready(out)

    # Pure-JAX reference using the same bf16-quantized inputs (f32 accumulate),
    # so only accumulation-order differences remain.
    x_bf = x.reshape(-1, INPUT_DIM).astype(jnp.bfloat16).astype(jnp.float32)
    w1_bf = w1.astype(jnp.bfloat16).astype(jnp.float32)
    w2_bf = w2.astype(jnp.bfloat16).astype(jnp.float32)
    h_ref = jnp.maximum(x_bf @ w1_bf.T, 0.0)
    h_ref = h_ref.astype(jnp.bfloat16).astype(jnp.float32)
    ref = h_ref @ w2_bf.T

    assert out.shape == (2, N_CLASS)
    assert jnp.allclose(out, ref, atol=1e-3, rtol=1e-3)

    print("KERNEL_OK")
</pallas_src>

<mosaic_0001>
module attributes {stable_mosaic.version = 11 : i64} {
  func.func @mlp_kernel(%arg0: i32, %arg1: memref<8x784xbf16, #tpu.memory_space<vmem>>, %arg2: memref<784x128xbf16, #tpu.memory_space<vmem>>, %arg3: memref<128x128xbf16, #tpu.memory_space<vmem>>, %arg4: memref<8x128xf32, #tpu.memory_space<vmem>>) attributes {dimension_semantics = [#tpu.dimension_semantics<parallel>], iteration_bounds = array<i64: 1>, scalar_prefetch = 0 : i64, scratch_operands = 0 : i64, tpu.core_type = #tpu.core_type<tc>, window_params = [{transform_indices = @transform_0, window_bounds = array<i64: 8, 784>}, {pipeline_mode = #tpu.pipeline_mode<synchronous>, transform_indices = @transform_1, window_bounds = array<i64: 784, 128>}, {pipeline_mode = #tpu.pipeline_mode<synchronous>, transform_indices = @transform_2, window_bounds = array<i64: 128, 128>}, {transform_indices = @transform_3, window_bounds = array<i64: 8, 128>}]} {
    %c0 = arith.constant 0 : index
    %c0_0 = arith.constant 0 : index
    %0 = vector.load %arg1[%c0, %c0_0] : memref<8x784xbf16, #tpu.memory_space<vmem>>, vector<8x784xbf16>
    %c0_1 = arith.constant 0 : index
    %c0_2 = arith.constant 0 : index
    %1 = vector.load %arg2[%c0_1, %c0_2] : memref<784x128xbf16, #tpu.memory_space<vmem>>, vector<784x128xbf16>
    %cst = arith.constant dense<0.000000e+00> : vector<8x128xf32>
    %2 = tpu.matmul %0, %1, %cst {dimension_numbers = #tpu.dot_dimension_numbers<[1], [0], [0], [1], [0, 0, 1, 1], [], []>} : vector<8x784xbf16>, vector<784x128xbf16>, vector<8x128xf32> -> vector<8x128xf32>
    %cst_3 = arith.constant 0.000000e+00 : f32
    %3 = vector.broadcast %cst_3 : f32 to vector<8x128xf32>
    %4 = arith.maximumf %2, %3 : vector<8x128xf32>
    %5 = arith.truncf %4 : vector<8x128xf32> to vector<8x128xbf16>
    %c0_4 = arith.constant 0 : index
    %c0_5 = arith.constant 0 : index
    %6 = vector.load %arg3[%c0_4, %c0_5] : memref<128x128xbf16, #tpu.memory_space<vmem>>, vector<128x128xbf16>
    %cst_6 = arith.constant dense<0.000000e+00> : vector<8x128xf32>
    %7 = tpu.matmul %5, %6, %cst_6 {dimension_numbers = #tpu.dot_dimension_numbers<[1], [0], [0], [1], [0, 0, 1, 1], [], []>} : vector<8x128xbf16>, vector<128x128xbf16>, vector<8x128xf32> -> vector<8x128xf32>
    %c0_7 = arith.constant 0 : index
    %c0_8 = arith.constant 0 : index
    %8 = vector.load %arg4[%c0_7, %c0_8] : memref<8x128xf32, #tpu.memory_space<vmem>>, vector<8x128xf32>
    tpu.vector_store %arg4[%c0_7, %c0_8], %7 {strides = array<i32>} : memref<8x128xf32, #tpu.memory_space<vmem>>, vector<8x128xf32>,
    return
  }
  func.func @transform_0(%arg0: i32) -> (i32, i32) {
    %c0_i32 = arith.constant 0 : i32
    %c0_i32_0 = arith.constant 0 : i32
    return %arg0, %c0_i32 : i32, i32
  }
  func.func @transform_1(%arg0: i32) -> (i32, i32) {
    %c0_i32 = arith.constant 0 : i32
    %c0_i32_0 = arith.constant 0 : i32
    %c0_i32_1 = arith.constant 0 : i32
    return %c0_i32, %c0_i32_0 : i32, i32
  }
  func.func @transform_2(%arg0: i32) -> (i32, i32) {
    %c0_i32 = arith.constant 0 : i32
    %c0_i32_0 = arith.constant 0 : i32
    %c0_i32_1 = arith.constant 0 : i32
    return %c0_i32, %c0_i32_0 : i32, i32
  }
  func.func @transform_3(%arg0: i32) -> (i32, i32) {
    %c0_i32 = arith.constant 0 : i32
    %c0_i32_0 = arith.constant 0 : i32
    return %arg0, %c0_i32 : i32, i32
  }
}

</mosaic_0001>

<llo_original>
// kernel: tpu_custom_call.1
$region0: #{tpu_custom_call.1}
  #allocation0 [shape = 'u32[]', space=smem, size = 0x4, offset = 0x4, fixed_abs, tag = 'smem constant byte address 0x4 - core index']
  #allocation1 [shape = 'u32[144,128]{1,0:T(1,128)}', space=vmem, size = 0x12000, scoped, tag = 'internal scratch']
  %s0 = inlined_call_operand.hbm [shape: bf16[8,784], index: 0, kind: input, shape index: {}]
  %s1 = inlined_call_operand.hbm [shape: bf16[784,128], index: 1, kind: input, shape index: {}]
  %s2 = inlined_call_operand.hbm [shape: bf16[128,128], index: 2, kind: input, shape index: {}]
  %s3 = inlined_call_operand.hbm [shape: f32[8,128], index: 3, kind: output, shape index: {}]
  %s4 = sld [smem:[#allocation0]]
  $region34: #{tpu_custom_call.1} parent=0
    _
  %s6 = ssub.s32 1, %s4
  %s7 = scalar_select 0, %s6, %s4
  $region1: #{tpu_custom_call.1} parent=0
    #allocation2 [shape = 'u8[14336]{0}', space=vmem, size = 0x3800, scoped, tag = 'input window, operand 0, single buffered']
    #allocation3 [shape = 's32[1]{0}', space=sflag, size = 0x4, scoped, tag = 'scoped memory for tpu_custom_call.1']
    #allocation4 [shape = 's32[1]{0}', space=sflag, size = 0x4, scoped, tag = 'scoped memory for tpu_custom_call.1']
    #allocation5 [shape = 'u8[200704]{0}', space=vmem, size = 0x31000, scoped, tag = 'input window, operand 1, single buffered']
    #allocation6 [shape = 's32[1]{0}', space=sflag, size = 0x4, scoped, tag = 'scoped memory for tpu_custom_call.1']
    #allocation7 [shape = 'u8[32768]{0}', space=vmem, size = 0x8000, scoped, tag = 'input window, operand 2, single buffered']
    #allocation8 [shape = 'u8[4096]{0}', space=vmem, size = 0x1000, scoped, tag = 'output window, operand 0, single buffered']
    %8 = vsyncpa [#allocation3], 0
    %9 = vsyncpa [#allocation6], 0
    %10 = vsyncpa [#allocation4], 0
    // Predicated region
    $region2: #{tpu_custom_call.1} parent=1 // pred_check
      _
    $region3: #{tpu_custom_call.1} parent=1 // pred_check_branch
      %12 = sbr.rel (0) target = $region5
    $region4: #{tpu_custom_call.1} parent=1 // pred_region
      %s14 = ssub.s32 448, 448
      %15 = vsyncadd [#allocation3], %s14
      %s17 = sshll.u32 [#allocation2], 4
      %s18 = int_to_ptr.vmem [resolvable:$true] %s17
      %20 = dma.hbm_to_vmem [thread:$0]  %s0, 448, %s18, [#allocation3]
    $region5: #{tpu_custom_call.1} parent=1 // pred_fallthru
      _
    // Predicated region
    $region6: #{tpu_custom_call.1} parent=1 // pred_check
      _
    $region7: #{tpu_custom_call.1} parent=1 // pred_check_branch
      %22 = sbr.rel (0) target = $region9
    $region8: #{tpu_custom_call.1} parent=1 // pred_region
      %s24 = ssub.s32 6272, 6272
      %25 = vsyncadd [#allocation6], %s24
      %s26 = sshll.u32 [#allocation5], 4
      %s27 = int_to_ptr.vmem [resolvable:$true] %s26
      %32 = dma.hbm_to_vmem [thread:$0]  %s1, 6272, %s27, [#allocation6], 64, 64, 4
    $region9: #{tpu_custom_call.1} parent=1 // pred_fallthru
      _
    // Predicated region
    $region10: #{tpu_custom_call.1} parent=1 // pred_check
      _
    $region11: #{tpu_custom_call.1} parent=1 // pred_check_branch
      %34 = sbr.rel (0) target = $region13
    $region12: #{tpu_custom_call.1} parent=1 // pred_region
      %s36 = ssub.s32 1024, 1024
      %37 = vsyncadd [#allocation6], %s36
      %s38 = sshll.u32 [#allocation7], 4
      %s39 = int_to_ptr.vmem [resolvable:$true] %s38
      %44 = dma.hbm_to_vmem [thread:$0]  %s2, 1024, %s39, [#allocation6], 64, 64, 4
    $region13: #{tpu_custom_call.1} parent=1 // pred_fallthru
      _
    // Predicated region
    $region14: #{tpu_custom_call.1} parent=1 // pred_check
      _
    $region15: #{tpu_custom_call.1} parent=1 // pred_check_branch
      %46 = sbr.rel (0) target = $region17
    $region16: #{tpu_custom_call.1} parent=1 // pred_region
      %47 = dma.done [#allocation3], 448
    $region17: #{tpu_custom_call.1} parent=1 // pred_fallthru
      _
    // Predicated region
    $region18: #{tpu_custom_call.1} parent=1 // pred_check
      _
    $region19: #{tpu_custom_call.1} parent=1 // pred_check_branch
      %49 = sbr.rel (0) target = $region21
    $region20: #{tpu_custom_call.1} parent=1 // pred_region
      %50 = dma.done [#allocation6], 6272
    $region21: #{tpu_custom_call.1} parent=1 // pred_fallthru
      _
    // Predicated region
    $region22: #{tpu_custom_call.1} parent=1 // pred_check
      _
    $region23: #{tpu_custom_call.1} parent=1 // pred_check_branch
      %52 = sbr.rel (0) target = $region25
    $region24: #{tpu_custom_call.1} parent=1 // pred_region
      %53 = dma.done [#allocation6], 1024
    $region25: #{tpu_custom_call.1} parent=1 // pred_fallthru
      _
    %v55 = vld [vmem:[#allocation2] sm:$0xff]
    %v56 = vld [vmem:[#allocation2 + $0x8] sm:$0xff]
    %v57 = vld [vmem:[#allocation2 + $0x10] sm:$0xff]
    %v58 = vld [vmem:[#allocation2 + $0x18] sm:$0xf]
    %v59 = vld [vmem:[#allocation5] sm:$0xf]
    %v60 = vld [vmem:[#allocation5 + $0x4] sm:$0xf]
    %v61 = vld [vmem:[#allocation5 + $0x8] sm:$0xf]
    %v62 = vld [vmem:[#allocation5 + $0xc] sm:$0xf]
    %v63 = vld [vmem:[#allocation5 + $0x10] sm:$0xf]
    %v64 = vld [vmem:[#allocation5 + $0x14] sm:$0xf]
    %v65 = vld [vmem:[#allocation5 + $0x18] sm:$0xf]
    %v66 = vld [vmem:[#allocation5 + $0x1c] sm:$0xf]
    %v67 = vld [vmem:[#allocation5 + $0x20] sm:$0xf]
    %v68 = vld [vmem:[#allocation5 + $0x24] sm:$0xf]
    %v69 = vld [vmem:[#allocation5 + $0x28] sm:$0xf]
    %v70 = vld [vmem:[#allocation5 + $0x2c] sm:$0xf]
    %v71 = vld [vmem:[#allocation5 + $0x30] sm:$0xf]
    %v72 = vld [vmem:[#allocation5 + $0x34] sm:$0xf]
    %v73 = vld [vmem:[#allocation5 + $0x38] sm:$0xf]
    %v74 = vld [vmem:[#allocation5 + $0x3c] sm:$0xf]
    %v75 = vld [vmem:[#allocation5 + $0x40] sm:$0xf]
    %v76 = vld [vmem:[#allocation5 + $0x44] sm:$0xf]
    %v77 = vld [vmem:[#allocation5 + $0x48] sm:$0xf]
    %v78 = vld [vmem:[#allocation5 + $0x4c] sm:$0xf]
    %v79 = vld [vmem:[#allocation5 + $0x50] sm:$0xf]
    %v80 = vld [vmem:[#allocation5 + $0x54] sm:$0xf]
    %v81 = vld [vmem:[#allocation5 + $0x58] sm:$0xf]
    %v82 = vld [vmem:[#allocation5 + $0x5c] sm:$0xf]
    %v83 = vld [vmem:[#allocation5 + $0x60] sm:$0xf]
    %v84 = vld [vmem:[#allocation5 + $0x64] sm:$0xf]
    %v85 = vld [vmem:[#allocation5 + $0x68] sm:$0xf]
    %v86 = vld [vmem:[#allocation5 + $0x6c] sm:$0xf]
    %v87 = vld [vmem:[#allocation5 + $0x70] sm:$0xf]
    %v88 = vld [vmem:[#allocation5 + $0x74] sm:$0xf]
    %v89 = vld [vmem:[#allocation5 + $0x78] sm:$0xf]
    %v90 = vld [vmem:[#allocation5 + $0x7c] sm:$0xf]
    %v91 = vld [vmem:[#allocation5 + $0x80] sm:$0xf]
    %v92 = vld [vmem:[#allocation5 + $0x84] sm:$0xf]
    %v93 = vld [vmem:[#allocation5 + $0x88] sm:$0xf]
    %v94 = vld [vmem:[#allocation5 + $0x8c] sm:$0xf]
    %v95 = vld [vmem:[#allocation5 + $0x90] sm:$0xf]
    %v96 = vld [vmem:[#allocation5 + $0x94] sm:$0xf]
    %v97 = vld [vmem:[#allocation5 + $0x98] sm:$0xf]
    %v98 = vld [vmem:[#allocation5 + $0x9c] sm:$0xf]
    %v99 = vld [vmem:[#allocation5 + $0xa0] sm:$0xf]
    %v100 = vld [vmem:[#allocation5 + $0xa4] sm:$0xf]
    %v101 = vld [vmem:[#allocation5 + $0xa8] sm:$0xf]
    %v102 = vld [vmem:[#allocation5 + $0xac] sm:$0xf]
    %v103 = vld [vmem:[#allocation5 + $0xb0] sm:$0xf]
    %v104 = vld [vmem:[#allocation5 + $0xb4] sm:$0xf]
    %v105 = vld [vmem:[#allocation5 + $0xb8] sm:$0xf]
    %v106 = vld [vmem:[#allocation5 + $0xbc] sm:$0xf]
    %v107 = vld [vmem:[#allocation5 + $0xc0] sm:$0xf]
    %v108 = vld [vmem:[#allocation5 + $0xc4] sm:$0xf]
    %v109 = vld [vmem:[#allocation5 + $0xc8] sm:$0xf]
    %v110 = vld [vmem:[#allocation5 + $0xcc] sm:$0xf]
    %v111 = vld [vmem:[#allocation5 + $0xd0] sm:$0xf]
    %v112 = vld [vmem:[#allocation5 + $0xd4] sm:$0xf]
    %v113 = vld [vmem:[#allocation5 + $0xd8] sm:$0xf]
    %v114 = vld [vmem:[#allocation5 + $0xdc] sm:$0xf]
    %v115 = vld [vmem:[#allocation5 + $0xe0] sm:$0xf]
    %v116 = vld [vmem:[#allocation5 + $0xe4] sm:$0xf]
    %v117 = vld [vmem:[#allocation5 + $0xe8] sm:$0xf]
    %v118 = vld [vmem:[#allocation5 + $0xec] sm:$0xf]
    %v119 = vld [vmem:[#allocation5 + $0xf0] sm:$0xf]
    %v120 = vld [vmem:[#allocation5 + $0xf4] sm:$0xf]
    %v121 = vld [vmem:[#allocation5 + $0xf8] sm:$0xf]
    %v122 = vld [vmem:[#allocation5 + $0xfc] sm:$0xf]
    %v123 = vld [vmem:[#allocation5 + $0x100] sm:$0xf]
    %v124 = vld [vmem:[#allocation5 + $0x104] sm:$0xf]
    %v125 = vld [vmem:[#allocation5 + $0x108] sm:$0xf]
    %v126 = vld [vmem:[#allocation5 + $0x10c] sm:$0xf]
    %v127 = vld [vmem:[#allocation5 + $0x110] sm:$0xf]
    %v128 = vld [vmem:[#allocation5 + $0x114] sm:$0xf]
    %v129 = vld [vmem:[#allocation5 + $0x118] sm:$0xf]
    %v130 = vld [vmem:[#allocation5 + $0x11c] sm:$0xf]
    %v131 = vld [vmem:[#allocation5 + $0x120] sm:$0xf]
    %v132 = vld [vmem:[#allocation5 + $0x124] sm:$0xf]
    %v133 = vld [vmem:[#allocation5 + $0x128] sm:$0xf]
    %v134 = vld [vmem:[#allocation5 + $0x12c] sm:$0xf]
    %v135 = vld [vmem:[#allocation5 + $0x130] sm:$0xf]
    %v136 = vld [vmem:[#allocation5 + $0x134] sm:$0xf]
    %v137 = vld [vmem:[#allocation5 + $0x138] sm:$0xf]
    %v138 = vld [vmem:[#allocation5 + $0x13c] sm:$0xf]
    %v139 = vld [vmem:[#allocation5 + $0x140] sm:$0xf]
    %v140 = vld [vmem:[#allocation5 + $0x144] sm:$0xf]
    %v141 = vld [vmem:[#allocation5 + $0x148] sm:$0xf]
    %v142 = vld [vmem:[#allocation5 + $0x14c] sm:$0xf]
    %v143 = vld [vmem:[#allocation5 + $0x150] sm:$0xf]
    %v144 = vld [vmem:[#allocation5 + $0x154] sm:$0xf]
    %v145 = vld [vmem:[#allocation5 + $0x158] sm:$0xf]
    %v146 = vld [vmem:[#allocation5 + $0x15c] sm:$0xf]
    %v147 = vld [vmem:[#allocation5 + $0x160] sm:$0xf]
    %v148 = vld [vmem:[#allocation5 + $0x164] sm:$0xf]
    %v149 = vld [vmem:[#allocation5 + $0x168] sm:$0xf]
    %v150 = vld [vmem:[#allocation5 + $0x16c] sm:$0xf]
    %v151 = vld [vmem:[#allocation5 + $0x170] sm:$0xf]
    %v152 = vld [vmem:[#allocation5 + $0x174] sm:$0xf]
    %v153 = vld [vmem:[#allocation5 + $0x178] sm:$0xf]
    %v154 = vld [vmem:[#allocation5 + $0x17c] sm:$0xf]
    %v155 = vld [vmem:[#allocation5 + $0x180] sm:$0xf]
    %v156 = vld [vmem:[#allocation5 + $0x184] sm:$0xf]
    %v161 = vunpack.c.l.b16 %v55
    %v162 = vunpack.c.h.b16 %v55
    %v163 = vunpack.c.l.b16 %v56
    %v164 = vunpack.c.h.b16 %v56
    %v165 = vunpack.c.l.b16 %v57
    %v166 = vunpack.c.h.b16 %v57
    %v167 = vunpack.c.l.b16 %v58
    %v168 = vpack.c.b16 %v161, %v161
    %v169 = vpack.c.b16 %v162, %v162
    %v170 = vpack.c.b16 %v163, %v163
    %v171 = vpack.c.b16 %v164, %v164
    %v172 = vpack.c.b16 %v165, %v165
    %v173 = vpack.c.b16 %v166, %v166
    %v174 = vpack.c.b16 %v167, %v167
    %v279 = vunpack.c.l.b16 %v59
    %v280 = vunpack.c.l.b16 %v60
    %v281 = vunpack.c.l.b16 %v61
    %v282 = vunpack.c.l.b16 %v62
    %v283 = vunpack.c.l.b16 %v63
    %v284 = vunpack.c.l.b16 %v64
    %v285 = vunpack.c.l.b16 %v65
    %v286 = vunpack.c.l.b16 %v66
    %v287 = vunpack.c.l.b16 %v67
    %v288 = vunpack.c.l.b16 %v68
    %v289 = vunpack.c.l.b16 %v69
    %v290 = vunpack.c.l.b16 %v70
    %v291 = vunpack.c.l.b16 %v71
    %v292 = vunpack.c.l.b16 %v72
    %v293 = vunpack.c.l.b16 %v73
    %v294 = vunpack.c.l.b16 %v74
    %v295 = vunpack.c.l.b16 %v75
    %v296 = vunpack.c.l.b16 %v76
    %v297 = vunpack.c.l.b16 %v77
    %v298 = vunpack.c.l.b16 %v78
    %v299 = vunpack.c.l.b16 %v79
    %v300 = vunpack.c.l.b16 %v80
    %v301 = vunpack.c.l.b16 %v81
    %v302 = vunpack.c.l.b16 %v82
    %v303 = vunpack.c.l.b16 %v83
    %v304 = vunpack.c.l.b16 %v84
    %v305 = vunpack.c.l.b16 %v85
    %v306 = vunpack.c.l.b16 %v86
    %v307 = vunpack.c.l.b16 %v87
    %v308 = vunpack.c.l.b16 %v88
    %v309 = vunpack.c.l.b16 %v89
    %v310 = vunpack.c.l.b16 %v90
    %v311 = vunpack.c.l.b16 %v91
    %v312 = vunpack.c.l.b16 %v92
    %v313 = vunpack.c.l.b16 %v93
    %v314 = vunpack.c.l.b16 %v94
    %v315 = vunpack.c.l.b16 %v95
    %v316 = vunpack.c.l.b16 %v96
    %v317 = vunpack.c.l.b16 %v97
    %v318 = vunpack.c.l.b16 %v98
    %v319 = vunpack.c.l.b16 %v99
    %v320 = vunpack.c.l.b16 %v100
    %v321 = vunpack.c.l.b16 %v101
    %v322 = vunpack.c.l.b16 %v102
    %v323 = vunpack.c.l.b16 %v103
    %v324 = vunpack.c.l.b16 %v104
    %v325 = vunpack.c.l.b16 %v105
    %v326 = vunpack.c.l.b16 %v106
    %v327 = vunpack.c.l.b16 %v107
    %v328 = vunpack.c.l.b16 %v108
    %v329 = vunpack.c.l.b16 %v109
    %v330 = vunpack.c.l.b16 %v110
    %v331 = vunpack.c.l.b16 %v111
    %v332 = vunpack.c.l.b16 %v112
    %v333 = vunpack.c.l.b16 %v113
    %v334 = vunpack.c.l.b16 %v114
    %v335 = vunpack.c.l.b16 %v115
    %v336 = vunpack.c.l.b16 %v116
    %v337 = vunpack.c.l.b16 %v117
    %v338 = vunpack.c.l.b16 %v118
    %v339 = vunpack.c.l.b16 %v119
    %v340 = vunpack.c.l.b16 %v120
    %v341 = vunpack.c.l.b16 %v121
    %v342 = vunpack.c.l.b16 %v122
    %v343 = vunpack.c.l.b16 %v123
    %v344 = vunpack.c.l.b16 %v124
    %v345 = vunpack.c.l.b16 %v125
    %v346 = vunpack.c.l.b16 %v126
    %v347 = vunpack.c.l.b16 %v127
    %v348 = vunpack.c.l.b16 %v128
    %v349 = vunpack.c.l.b16 %v129
    %v350 = vunpack.c.l.b16 %v130
    %v351 = vunpack.c.l.b16 %v131
    %v352 = vunpack.c.l.b16 %v132
    %v353 = vunpack.c.l.b16 %v133
    %v354 = vunpack.c.l.b16 %v134
    %v355 = vunpack.c.l.b16 %v135
    %v356 = vunpack.c.l.b16 %v136
    %v357 = vunpack.c.l.b16 %v137
    %v358 = vunpack.c.l.b16 %v138
    %v359 = vunpack.c.l.b16 %v139
    %v360 = vunpack.c.l.b16 %v140
    %v361 = vunpack.c.l.b16 %v141
    %v362 = vunpack.c.l.b16 %v142
    %v363 = vunpack.c.l.b16 %v143
    %v364 = vunpack.c.l.b16 %v144
    %v365 = vunpack.c.l.b16 %v145
    %v366 = vunpack.c.l.b16 %v146
    %v367 = vunpack.c.l.b16 %v147
    %v368 = vunpack.c.l.b16 %v148
    %v369 = vunpack.c.l.b16 %v149
    %v370 = vunpack.c.l.b16 %v150
    %v371 = vunpack.c.l.b16 %v151
    %v372 = vunpack.c.l.b16 %v152
    %v373 = vunpack.c.l.b16 %v153
    %v374 = vunpack.c.l.b16 %v154
    %v375 = vunpack.c.l.b16 %v155
    %v376 = vunpack.c.l.b16 %v156
    %v377 = vpack.c.b16 %v280, %v279
    %v378 = vpack.c.b16 %v282, %v281
    %v379 = vpack.c.b16 %v284, %v283
    %v380 = vpack.c.b16 %v286, %v285
    %v381 = vpack.c.b16 %v288, %v287
    %v382 = vpack.c.b16 %v290, %v289
    %v383 = vpack.c.b16 %v292, %v291
    %v384 = vpack.c.b16 %v294, %v293
    %v385 = vpack.c.b16 %v296, %v295
    %v386 = vpack.c.b16 %v298, %v297
    %v387 = vpack.c.b16 %v300, %v299
    %v388 = vpack.c.b16 %v302, %v301
    %v389 = vpack.c.b16 %v304, %v303
    %v390 = vpack.c.b16 %v306, %v305
    %v391 = vpack.c.b16 %v308, %v307
    %v392 = vpack.c.b16 %v310, %v309
    %v393 = vpack.c.b16 %v312, %v311
    %v394 = vpack.c.b16 %v314, %v313
    %v395 = vpack.c.b16 %v316, %v315
    %v396 = vpack.c.b16 %v318, %v317
    %v397 = vpack.c.b16 %v320, %v319
    %v398 = vpack.c.b16 %v322, %v321
    %v399 = vpack.c.b16 %v324, %v323
    %v400 = vpack.c.b16 %v326, %v325
    %v401 = vpack.c.b16 %v328, %v327
    %v402 = vpack.c.b16 %v330, %v329
    %v403 = vpack.c.b16 %v332, %v331
    %v404 = vpack.c.b16 %v334, %v333
    %v405 = vpack.c.b16 %v336, %v335
    %v406 = vpack.c.b16 %v338, %v337
    %v407 = vpack.c.b16 %v340, %v339
    %v408 = vpack.c.b16 %v342, %v341
    %v409 = vpack.c.b16 %v344, %v343
    %v410 = vpack.c.b16 %v346, %v345
    %v411 = vpack.c.b16 %v348, %v347
    %v412 = vpack.c.b16 %v350, %v349
    %v413 = vpack.c.b16 %v352, %v351
    %v414 = vpack.c.b16 %v354, %v353
    %v415 = vpack.c.b16 %v356, %v355
    %v416 = vpack.c.b16 %v358, %v357
    %v417 = vpack.c.b16 %v360, %v359
    %v418 = vpack.c.b16 %v362, %v361
    %v419 = vpack.c.b16 %v364, %v363
    %v420 = vpack.c.b16 %v366, %v365
    %v421 = vpack.c.b16 %v368, %v367
    %v422 = vpack.c.b16 %v370, %v369
    %v423 = vpack.c.b16 %v372, %v371
    %v424 = vpack.c.b16 %v374, %v373
    %v425 = vpack.c.b16 %v376, %v375
    %vm475 = vcmask 130048
    %v477 = vsel %vm475, %v174, 0
    %479 = vmatprep.subr.bf16.mxu0 0
    %480 = vmatpush1.bf16.msra.mxu0 %v384
    %481 = vmatprep.subr.bf16.mxu0 0
    %482 = vmatpush1.bf16.msra.mxu0 %v383
    %483 = vmatprep.subr.bf16.mxu0 0
    %484 = vmatpush1.bf16.msra.mxu0 %v382
    %485 = vmatprep.subr.bf16.mxu0 0
    %486 = vmatpush1.bf16.msra.mxu0 %v381
    %487 = vmatprep.subr.bf16.mxu0 0
    %488 = vmatpush1.bf16.msra.mxu0 %v380
    %489 = vmatprep.subr.bf16.mxu0 0
    %490 = vmatpush1.bf16.msra.mxu0 %v379
    %491 = vmatprep.subr.bf16.mxu0 0
    %492 = vmatpush1.bf16.msra.mxu0 %v378
    %493 = vmatprep.subr.bf16.mxu0 0
    %494 = vmatpush1.bf16.msra.mxu0 %v377
    %495 = vmatprep.subr.bf16.mxu0 0
    %496 = vmatpush2.bf16.msra.mxu0 %v392
    %497 = vmatprep.subr.bf16.mxu0 0
    %498 = vmatpush2.bf16.msra.mxu0 %v391
    %499 = vmatprep.subr.bf16.mxu0 0
    %500 = vmatpush2.bf16.msra.mxu0 %v390
    %501 = vmatprep.subr.bf16.mxu0 0
    %502 = vmatpush2.bf16.msra.mxu0 %v389
    %503 = vmatprep.subr.bf16.mxu0 0
    %504 = vmatpush2.bf16.msra.mxu0 %v388
    %505 = vmatprep.subr.bf16.mxu0 0
    %506 = vmatpush2.bf16.msra.mxu0 %v387
    %507 = vmatprep.subr.bf16.mxu0 0
    %508 = vmatpush2.bf16.msra.mxu0 %v386
    %509 = vmatprep.subr.bf16.mxu0 0
    %510 = vmatpush2.bf16.msra.mxu0 %v385
    %511 = vmatprep.mubr.bf16.mxu0 %v169
    %512 = vmatmul.mubr.bf16.gmra.mxu0 %v168
    %v513 = vpop.f32.mrf.mxu0
    %v514 = vadd.f32 0.0, %v513
    %v515 = vpop.f32.mrf.mxu0
    %v516 = vpop.f32.mrf.mxu0
    %v517 = vpop.f32.mrf.mxu0
    %518 = vdwg.mxu0
    %519 = vmatprep.subr.bf16.mxu0 0
    %520 = vmatpush1.bf16.msra.mxu0 %v400
    %521 = vmatprep.subr.bf16.mxu0 0
    %522 = vmatpush1.bf16.msra.mxu0 %v399
    %523 = vmatprep.subr.bf16.mxu0 0
    %524 = vmatpush1.bf16.msra.mxu0 %v398
    %525 = vmatprep.subr.bf16.mxu0 0
    %526 = vmatpush1.bf16.msra.mxu0 %v397
    %527 = vmatprep.subr.bf16.mxu0 0
    %528 = vmatpush1.bf16.msra.mxu0 %v396
    %529 = vmatprep.subr.bf16.mxu0 0
    %530 = vmatpush1.bf16.msra.mxu0 %v395
    %531 = vmatprep.subr.bf16.mxu0 0
    %532 = vmatpush1.bf16.msra.mxu0 %v394
    %533 = vmatprep.subr.bf16.mxu0 0
    %534 = vmatpush1.bf16.msra.mxu0 %v393
    %535 = vmatprep.subr.bf16.mxu0 0
    %536 = vmatpush2.bf16.msra.mxu0 %v408
    %537 = vmatprep.subr.bf16.mxu0 0
    %538 = vmatpush2.bf16.msra.mxu0 %v407
    %539 = vmatprep.subr.bf16.mxu0 0
    %540 = vmatpush2.bf16.msra.mxu0 %v406
    %541 = vmatprep.subr.bf16.mxu0 0
    %542 = vmatpush2.bf16.msra.mxu0 %v405
    %543 = vmatprep.subr.bf16.mxu0 0
    %544 = vmatpush2.bf16.msra.mxu0 %v404
    %545 = vmatprep.subr.bf16.mxu0 0
    %546 = vmatpush2.bf16.msra.mxu0 %v403
    %547 = vmatprep.subr.bf16.mxu0 0
    %548 = vmatpush2.bf16.msra.mxu0 %v402
    %549 = vmatprep.subr.bf16.mxu0 0
    %550 = vmatpush2.bf16.msra.mxu0 %v401
    %551 = vmatprep.mubr.bf16.mxu0 %v171
    %552 = vmatmul.mubr.bf16.gmra.mxu0 %v170
    %v553 = vpop.f32.mrf.mxu0
    %v554 = vadd.f32 %v514, %v553
    %v555 = vpop.f32.mrf.mxu0
    %v556 = vpop.f32.mrf.mxu0
    %v557 = vpop.f32.mrf.mxu0
    %558 = vdwg.mxu0
    %559 = vmatprep.subr.bf16.mxu0 0
    %560 = vmatpush1.bf16.msra.mxu0 %v416
    %561 = vmatprep.subr.bf16.mxu0 0
    %562 = vmatpush1.bf16.msra.mxu0 %v415
    %563 = vmatprep.subr.bf16.mxu0 0
    %564 = vmatpush1.bf16.msra.mxu0 %v414
    %565 = vmatprep.subr.bf16.mxu0 0
    %566 = vmatpush1.bf16.msra.mxu0 %v413
    %567 = vmatprep.subr.bf16.mxu0 0
    %568 = vmatpush1.bf16.msra.mxu0 %v412
    %569 = vmatprep.subr.bf16.mxu0 0
    %570 = vmatpush1.bf16.msra.mxu0 %v411
    %571 = vmatprep.subr.bf16.mxu0 0
    %572 = vmatpush1.bf16.msra.mxu0 %v410
    %573 = vmatprep.subr.bf16.mxu0 0
    %574 = vmatpush1.bf16.msra.mxu0 %v409
    %575 = vmatprep.subr.bf16.mxu0 0
    %576 = vmatpush2.bf16.msra.mxu0 %v424
    %577 = vmatprep.subr.bf16.mxu0 0
    %578 = vmatpush2.bf16.msra.mxu0 %v423
    %579 = vmatprep.subr.bf16.mxu0 0
    %580 = vmatpush2.bf16.msra.mxu0 %v422
    %581 = vmatprep.subr.bf16.mxu0 0
    %582 = vmatpush2.bf16.msra.mxu0 %v421
    %583 = vmatprep.subr.bf16.mxu0 0
    %584 = vmatpush2.bf16.msra.mxu0 %v420
    %585 = vmatprep.subr.bf16.mxu0 0
    %586 = vmatpush2.bf16.msra.mxu0 %v419
    %587 = vmatprep.subr.bf16.mxu0 0
    %588 = vmatpush2.bf16.msra.mxu0 %v418
    %589 = vmatprep.subr.bf16.mxu0 0
    %590 = vmatpush2.bf16.msra.mxu0 %v417
    %591 = vmatprep.mubr.bf16.mxu0 %v173
    %592 = vmatmul.mubr.bf16.gmra.mxu0 %v172
    %v593 = vpop.f32.mrf.mxu0
    %v594 = vadd.f32 %v554, %v593
    %v595 = vpop.f32.mrf.mxu0
    %v596 = vpop.f32.mrf.mxu0
    %v597 = vpop.f32.mrf.mxu0
    %598 = vdwg.mxu0
    %599 = vmatprep.subr.bf16.mxu0 0
    %600 = vmatpush1.bf16.msra.mxu0 0
    %601 = vmatprep.subr.bf16.mxu0 0
    %602 = vmatpush1.bf16.msra.mxu0 0
    %603 = vmatprep.subr.bf16.mxu0 0
    %604 = vmatpush1.bf16.msra.mxu0 0
    %605 = vmatprep.subr.bf16.mxu0 0
    %606 = vmatpush1.bf16.msra.mxu0 0
    %607 = vmatprep.subr.bf16.mxu0 0
    %608 = vmatpush1.bf16.msra.mxu0 0
    %609 = vmatprep.subr.bf16.mxu0 0
    %610 = vmatpush1.bf16.msra.mxu0 0
    %611 = vmatprep.subr.bf16.mxu0 0
    %612 = vmatpush1.bf16.msra.mxu0 0
    %613 = vmatprep.subr.bf16.mxu0 0
    %614 = vmatpush1.bf16.msra.mxu0 %v425
    %615 = vmatprep.subr.bf16.mxu0 0
    %616 = vmatpush2.bf16.msra.mxu0 0
    %617 = vmatprep.subr.bf16.mxu0 0
    %618 = vmatpush2.bf16.msra.mxu0 0
    %619 = vmatprep.subr.bf16.mxu0 0
    %620 = vmatpush2.bf16.msra.mxu0 0
    %621 = vmatprep.subr.bf16.mxu0 0
    %622 = vmatpush2.bf16.msra.mxu0 0
    %623 = vmatprep.subr.bf16.mxu0 0
    %624 = vmatpush2.bf16.msra.mxu0 0
    %625 = vmatprep.subr.bf16.mxu0 0
    %626 = vmatpush2.bf16.msra.mxu0 0
    %627 = vmatprep.subr.bf16.mxu0 0
    %628 = vmatpush2.bf16.msra.mxu0 0
    %629 = vmatprep.subr.bf16.mxu0 0
    %630 = vmatpush2.bf16.msra.mxu0 0
    %631 = vmatprep.mubr.bf16.mxu0 0
    %632 = vmatmul.mubr.bf16.gmra.mxu0 %v477
    %v633 = vpop.f32.mrf.mxu0
    %v634 = vadd.f32 %v594, %v633
    %v635 = vpop.f32.mrf.mxu0
    %v636 = vpop.f32.mrf.mxu0
    %v637 = vpop.f32.mrf.mxu0
    %638 = vdwg.mxu0
    %v639 = vmax.f32 %v634, 0.0
    %v640 = vpack.c.bf16 %v639, %v639
    %v641 = vld [vmem:[#allocation7] sm:$0xf]
    %v642 = vld [vmem:[#allocation7 + $0x4] sm:$0xf]
    %v643 = vld [vmem:[#allocation7 + $0x8] sm:$0xf]
    %v644 = vld [vmem:[#allocation7 + $0xc] sm:$0xf]
    %v645 = vld [vmem:[#allocation7 + $0x10] sm:$0xf]
    %v646 = vld [vmem:[#allocation7 + $0x14] sm:$0xf]
    %v647 = vld [vmem:[#allocation7 + $0x18] sm:$0xf]
    %v648 = vld [vmem:[#allocation7 + $0x1c] sm:$0xf]
    %v649 = vld [vmem:[#allocation7 + $0x20] sm:$0xf]
    %v650 = vld [vmem:[#allocation7 + $0x24] sm:$0xf]
    %v651 = vld [vmem:[#allocation7 + $0x28] sm:$0xf]
    %v652 = vld [vmem:[#allocation7 + $0x2c] sm:$0xf]
    %v653 = vld [vmem:[#allocation7 + $0x30] sm:$0xf]
    %v654 = vld [vmem:[#allocation7 + $0x34] sm:$0xf]
    %v655 = vld [vmem:[#allocation7 + $0x38] sm:$0xf]
    %v656 = vld [vmem:[#allocation7 + $0x3c] sm:$0xf]
    %v673 = vunpack.c.l.b16 %v641
    %v674 = vunpack.c.l.b16 %v642
    %v675 = vunpack.c.l.b16 %v643
    %v676 = vunpack.c.l.b16 %v644
    %v677 = vunpack.c.l.b16 %v645
    %v678 = vunpack.c.l.b16 %v646
    %v679 = vunpack.c.l.b16 %v647
    %v680 = vunpack.c.l.b16 %v648
    %v681 = vunpack.c.l.b16 %v649
    %v682 = vunpack.c.l.b16 %v650
    %v683 = vunpack.c.l.b16 %v651
    %v684 = vunpack.c.l.b16 %v652
    %v685 = vunpack.c.l.b16 %v653
    %v686 = vunpack.c.l.b16 %v654
    %v687 = vunpack.c.l.b16 %v655
    %v688 = vunpack.c.l.b16 %v656
    %v689 = vpack.c.b16 %v674, %v673
    %v690 = vpack.c.b16 %v676, %v675
    %v691 = vpack.c.b16 %v678, %v677
    %v692 = vpack.c.b16 %v680, %v679
    %v693 = vpack.c.b16 %v682, %v681
    %v694 = vpack.c.b16 %v684, %v683
    %v695 = vpack.c.b16 %v686, %v685
    %v696 = vpack.c.b16 %v688, %v687
    %705 = vmatprep.subr.bf16.mxu0 0
    %706 = vmatpush1.bf16.msra.mxu0 %v696
    %707 = vmatprep.subr.bf16.mxu0 0
    %708 = vmatpush1.bf16.msra.mxu0 %v695
    %709 = vmatprep.subr.bf16.mxu0 0
    %710 = vmatpush1.bf16.msra.mxu0 %v694
    %711 = vmatprep.subr.bf16.mxu0 0
    %712 = vmatpush1.bf16.msra.mxu0 %v693
    %713 = vmatprep.subr.bf16.mxu0 0
    %714 = vmatpush1.bf16.msra.mxu0 %v692
    %715 = vmatprep.subr.bf16.mxu0 0
    %716 = vmatpush1.bf16.msra.mxu0 %v691
    %717 = vmatprep.subr.bf16.mxu0 0
    %718 = vmatpush1.bf16.msra.mxu0 %v690
    %719 = vmatprep.subr.bf16.mxu0 0
    %720 = vmatpush1.bf16.msra.mxu0 %v689
    %721 = vmatprep.subr.bf16.mxu0 0
    %722 = vmatpush2.bf16.msra.mxu0 0
    %723 = vmatprep.subr.bf16.mxu0 0
    %724 = vmatpush2.bf16.msra.mxu0 0
    %725 = vmatprep.subr.bf16.mxu0 0
    %726 = vmatpush2.bf16.msra.mxu0 0
    %727 = vmatprep.subr.bf16.mxu0 0
    %728 = vmatpush2.bf16.msra.mxu0 0
    %729 = vmatprep.subr.bf16.mxu0 0
    %730 = vmatpush2.bf16.msra.mxu0 0
    %731 = vmatprep.subr.bf16.mxu0 0
    %732 = vmatpush2.bf16.msra.mxu0 0
    %733 = vmatprep.subr.bf16.mxu0 0
    %734 = vmatpush2.bf16.msra.mxu0 0
    %735 = vmatprep.subr.bf16.mxu0 0
    %736 = vmatpush2.bf16.msra.mxu0 0
    %737 = vmatprep.mubr.bf16.mxu0 0
    %738 = vmatmul.mubr.bf16.gmra.mxu0 %v640
    %v739 = vpop.f32.mrf.mxu0
    %v740 = vadd.f32 0.0, %v739
    %v741 = vpop.f32.mrf.mxu0
    %v742 = vpop.f32.mrf.mxu0
    %v743 = vpop.f32.mrf.mxu0
    %744 = vdwg.mxu0
    %745 = vst [vmem:[#allocation8] sm:$0xff] %v740
    // Predicated region
    $region26: #{tpu_custom_call.1} parent=1 // pred_check
      _
    $region27: #{tpu_custom_call.1} parent=1 // pred_check_branch
      %747 = sbr.rel (0) target = $region29
    $region28: #{tpu_custom_call.1} parent=1 // pred_region
      %s749 = ssub.s32 128, 128
      %750 = vsyncadd [#allocation4], %s749
      %s752 = sshll.u32 [#allocation8], 4
      %s753 = int_to_ptr.vmem [resolvable:$true] %s752
      %755 = dma.vmem_to_hbm [thread:$0]  %s753, 128, %s3, [#allocation4]
    $region29: #{tpu_custom_call.1} parent=1 // pred_fallthru
      _
    // Predicated region
    $region30: #{tpu_custom_call.1} parent=1 // pred_check
      _
    $region31: #{tpu_custom_call.1} parent=1 // pred_check_branch
      %757 = sbr.rel (0) target = $region33
    $region32: #{tpu_custom_call.1} parent=1 // pred_region
      %758 = dma.done [#allocation4], 128
    $region33: #{tpu_custom_call.1} parent=1 // pred_fallthru
      _
    %759 = vsyncpa [#allocation3], 1
    %760 = vsyncpa [#allocation6], 1
    %761 = vsyncpa [#allocation4], 1

</llo_original>
